<compile_context>
chip_gen: v7x
topology: tpu7x:2x2x1
jax: 0.10.0
libtpu: 0.0.40
codegen_flags: <defaults>
</compile_context>

<pallas_src>
import jax
import jax.numpy as jnp
from jax.experimental import pallas as pl
from jax.experimental.pallas import tpu as pltpu

_LANE = 128
_N_SPLIT = 2          # leading "parallel" grid axis (engages both v7x TCs)


def _subspace_kernel(z_ref, l_ref, u_ref, mu_ref, h_ref, gram_ref, zl_ref):
    d = pl.program_id(1)                  # inner (dim-tile) step for this core

    # Grid-invariant zL = z * L: compute once per core, downcast once to the
    # MXU input dtype (bf16 params stay bf16 all the way to the MXU).
    @pl.when(d == 0)
    def _precompute_zl():
        zl = z_ref[...].astype(jnp.float32) * l_ref[...].astype(jnp.float32)
        zl_ref[...] = zl.astype(zl_ref.dtype)

    U = u_ref[...]                        # (n_basis, td), native dtype
    zL = zl_ref[...]                      # (bs, n_basis)

    # h_tile = zL @ U_tile + mu_tile, f32 MXU accumulation.
    h = jax.lax.dot_general(
        zL, U,
        dimension_numbers=(((1,), (0,)), ((), ())),
        preferred_element_type=jnp.float32)
    h = h + mu_ref[...].astype(jnp.float32)
    h_ref[...] = h.astype(h_ref.dtype)

    # Partial Gram over this dim tile: U_tile @ U_tile^T (f32 accumulation).
    # Contracting dims (1, 1) avoid materializing U.T explicitly.
    # TODO(synk): if a bundle dump shows this degenerate (nb x td x nb) MXU dot
    # (or a hidden per-tile XLU transpose) saturating once the DMA side is
    # fixed, recompute it on the otherwise-idle VPU/XLU instead.
    partial = jax.lax.dot_general(
        U, U,
        dimension_numbers=(((1,), (1,)), ((), ())),
        preferred_element_type=jnp.float32)

    @pl.when(d == 0)
    def _init_gram():
        gram_ref[...] = partial

    @pl.when(d != 0)
    def _acc_gram():
        gram_ref[...] += partial


def _round_up(x: int, m: int) -> int:
    return ((x + m - 1) // m) * m


def _per_step_byte_target() -> int:
    """Per-grid-step HBM byte target, by TPU generation (amortizes the ~0.35us
    fixed per-step overhead against that generation's HBM bandwidth)."""
    kind = ""
    try:
        kind = jax.devices()[0].device_kind.lower()
    except Exception:
        pass
    if "v7" in kind:
        return 4 << 20            # ~3.2 TB/s
    if "v6" in kind:
        return 2 << 20            # ~1.4 TB/s
    return 1 << 20                # v5e (~0.8 TB/s) and unknown


def _choose_dim_tile(dim: int, n_basis: int, bs: int,
                     u_itemsize: int, h_itemsize: int) -> int:
    """Lane-dense (multiple-of-128) dim tile sized from the HBM byte target,
    capped by a min-step count (DMA/compute overlap) and a VMEM tile budget."""
    per_col = n_basis * u_itemsize + bs * h_itemsize + u_itemsize  # bytes/column
    td = _per_step_byte_target() // per_col
    # Keep >= 4 inner steps per core when dim allows.
    min_total_steps = 4 * _N_SPLIT
    td = min(td, _round_up(max(1, -(-dim // min_total_steps)), _LANE))
    # Keep double-buffered U + h + mu tiles well under the scoped VMEM limit.
    vmem_tile_budget = 16 << 20
    td = min(td, vmem_tile_budget // (2 * per_col))
    td = max(_LANE, (td // _LANE) * _LANE)
    return int(td)


def subspace_layer(z, U, L, mu):
    """z: [bs, n_basis]; U: [n_basis, dim]; L: [n_basis]; mu: [dim].
    Returns (h [bs, dim], ortho_reg scalar)."""
    bs, n_basis = z.shape
    nb, dim = U.shape
    assert nb == n_basis and L.shape == (n_basis,) and mu.shape == (dim,)

    out_dtype = jnp.result_type(z.dtype, U.dtype)
    dot_dtype = U.dtype
    u_isz = jnp.dtype(U.dtype).itemsize
    h_isz = jnp.dtype(out_dtype).itemsize

    td = _choose_dim_tile(dim, n_basis, bs, u_isz, h_isz)
    dim_pad = _round_up(dim, td * _N_SPLIT)
    n_inner = dim_pad // (td * _N_SPLIT)

    U_p, mu_p = U, mu
    if dim_pad != dim:
        # Zero padding contributes exactly 0 to both h and the Gram.
        U_p = jnp.pad(U, ((0, 0), (0, dim_pad - dim)))
        mu_p = jnp.pad(mu, ((0, dim_pad - dim),))

    L2 = L.reshape(1, n_basis)            # keep >= 2-D for TPU vregs
    mu2 = mu_p.reshape(1, dim_pad)

    # Explicit VMEM limit with headroom over the double-buffered tiles
    # (scoped defaults are 16 MiB on v5e / 32 MiB on v6e+v7x, not physical).
    tile_bytes = 2 * td * (n_basis * u_isz + bs * h_isz + u_isz)
    vmem_limit = int(min(56 << 20, max(24 << 20, 2 * tile_bytes + (4 << 20))))

    h_pad, gram_parts = pl.pallas_call(
        _subspace_kernel,
        out_shape=(
            jax.ShapeDtypeStruct((bs, dim_pad), out_dtype),
            jax.ShapeDtypeStruct((_N_SPLIT, n_basis, n_basis), jnp.float32),
        ),
        grid_spec=pltpu.PrefetchScalarGridSpec(
            num_scalar_prefetch=0,
            grid=(_N_SPLIT, n_inner),
            in_specs=[
                # z and L are tiny and dim-independent: resident full blocks.
                pl.BlockSpec((bs, n_basis), lambda c, d: (0, 0)),
                pl.BlockSpec((1, n_basis), lambda c, d: (0, 0)),
                # U, mu tiled along dim (lane axis) -> double-buffered DMA.
                pl.BlockSpec((n_basis, td), lambda c, d: (0, c * n_inner + d)),
                pl.BlockSpec((1, td), lambda c, d: (0, c * n_inner + d)),
            ],
            out_specs=(
                pl.BlockSpec((bs, td), lambda c, d: (0, c * n_inner + d)),
                # Per-core partial Gram: resident accumulator across the inner
                # "arbitrary" axis, one block per "parallel" core index.
                pl.BlockSpec((None, n_basis, n_basis), lambda c, d: (c, 0, 0)),
            ),
            scratch_shapes=[
                pltpu.VMEM((bs, n_basis), dot_dtype),   # hoisted zL
            ],
        ),
        compiler_params=pltpu.CompilerParams(
            dimension_semantics=("parallel", "arbitrary"),
            vmem_limit_bytes=vmem_limit,
        ),
    )(z, L2, U_p, mu2)

    h = h_pad[:, :dim] if dim_pad != dim else h_pad
    gram = gram_parts.sum(axis=0)
    eye = jnp.eye(n_basis, dtype=jnp.float32)
    ortho_reg = jnp.mean((gram - eye) ** 2)
    return h, ortho_reg


def init_params(key, n_basis, dim, dtype=jnp.float32):
    """Deterministic init matching the PyTorch module:
       U: orthogonal rows (nn.init.orthogonal_), L: ones, mu: zeros."""
    a = jax.random.normal(key, (dim, n_basis), dtype=jnp.float32)
    q, _ = jnp.linalg.qr(a)               # (dim, n_basis), orthonormal columns
    U = q.T.astype(dtype)                 # (n_basis, dim), U @ U.T == I
    L = jnp.ones((n_basis,), dtype=dtype)
    mu = jnp.zeros((dim,), dtype=dtype)
    return U, L, mu


if __name__ == "__main__":
    key = jax.random.PRNGKey(0)
    k_param, k_z, k2_param, k2_z, k2_mu = jax.random.split(key, 5)

    # Small shapes consistent with the module: bs=2, n_basis=8, dim=32.
    bs, n_basis, dim = 2, 8, 32
    U, L, mu = init_params(k_param, n_basis, dim)
    z = jax.random.normal(k_z, (bs, n_basis), dtype=jnp.float32)

    h, reg = subspace_layer(z, U, L, mu)
    jax.block_until_ready((h, reg))

    h_ref = (z * L[None, :]) @ U + mu[None, :]
    reg_ref = jnp.mean((U @ U.T - jnp.eye(n_basis)) ** 2)
    assert h.shape == (bs, dim)
    assert jnp.allclose(h, h_ref, atol=1e-5, rtol=1e-5)
    assert jnp.allclose(reg, reg_ref, atol=1e-6, rtol=1e-5)

    # Second check: exercises the zero-padding path (dim=384 -> padded to a
    # multiple of tile*2) plus the multi-step Gram accumulation, with
    # non-trivial L and mu.
    bs2, n_basis2, dim2 = 2, 6, 384
    U2, L2p, mu2p = init_params(k2_param, n_basis2, dim2)
    L2p = L2p * 1.5
    mu2p = 0.1 * jax.random.normal(k2_mu, (dim2,), dtype=jnp.float32)
    z2 = jax.random.normal(k2_z, (bs2, n_basis2), dtype=jnp.float32)

    h2, reg2 = subspace_layer(z2, U2, L2p, mu2p)
    jax.block_until_ready((h2, reg2))

    h2_ref = (z2 * L2p[None, :]) @ U2 + mu2p[None, :]
    reg2_ref = jnp.mean((U2 @ U2.T - jnp.eye(n_basis2)) ** 2)
    assert h2.shape == (bs2, dim2)
    assert jnp.allclose(h2, h2_ref, atol=1e-4, rtol=1e-5)
    assert jnp.allclose(reg2, reg2_ref, atol=1e-6, rtol=1e-5)

    print("KERNEL_OK")
</pallas_src>

<mosaic_0001>
module attributes {stable_mosaic.version = 11 : i64} {
  func.func @_subspace_kernel(%arg0: i32, %arg1: i32, %arg2: memref<2x8xf32, #tpu.memory_space<vmem>>, %arg3: memref<1x8xf32, #tpu.memory_space<vmem>>, %arg4: memref<8x128xf32, #tpu.memory_space<vmem>>, %arg5: memref<1x128xf32, #tpu.memory_space<vmem>>, %arg6: memref<2x128xf32, #tpu.memory_space<vmem>>, %arg7: memref<1x8x8xf32, #tpu.memory_space<vmem>>, %arg8: memref<2x8xf32, #tpu.memory_space<vmem>>) attributes {dimension_semantics = [#tpu.dimension_semantics<parallel>, #tpu.dimension_semantics<arbitrary>], iteration_bounds = array<i64: 2, 1>, scalar_prefetch = 0 : i64, scratch_operands = 1 : i64, tpu.core_type = #tpu.core_type<tc>, window_params = [{pipeline_mode = #tpu.pipeline_mode<synchronous>, transform_indices = @transform_0, window_bounds = array<i64: 2, 8>}, {pipeline_mode = #tpu.pipeline_mode<synchronous>, transform_indices = @transform_1, window_bounds = array<i64: 1, 8>}, {transform_indices = @transform_2, window_bounds = array<i64: 8, 128>}, {transform_indices = @transform_3, window_bounds = array<i64: 1, 128>}, {transform_indices = @transform_4, window_bounds = array<i64: 2, 128>}, {transform_indices = @transform_5, window_bounds = array<i64: 1, 8, 8>}]} {
    %c0_i32 = arith.constant 0 : i32
    %0 = arith.cmpi eq, %arg1, %c0_i32 : i32
    %1 = arith.extui %0 : i1 to i32
    %c0_i32_0 = arith.constant 0 : i32
    %2 = arith.cmpi ne, %1, %c0_i32_0 : i32
    scf.if %2 {
      %c0_13 = arith.constant 0 : index
      %c0_14 = arith.constant 0 : index
      %17 = vector.load %arg2[%c0_13, %c0_14] : memref<2x8xf32, #tpu.memory_space<vmem>>, vector<2x8xf32>
      %c0_15 = arith.constant 0 : index
      %c0_16 = arith.constant 0 : index
      %18 = vector.load %arg3[%c0_15, %c0_16] : memref<1x8xf32, #tpu.memory_space<vmem>>, vector<1x8xf32>
      %19 = vector.broadcast %18 : vector<1x8xf32> to vector<2x8xf32>
      %20 = arith.mulf %17, %19 : vector<2x8xf32>
      %c0_17 = arith.constant 0 : index
      %c0_18 = arith.constant 0 : index
      %21 = vector.load %arg8[%c0_17, %c0_18] : memref<2x8xf32, #tpu.memory_space<vmem>>, vector<2x8xf32>
      tpu.vector_store %arg8[%c0_17, %c0_18], %20 {strides = array<i32>} : memref<2x8xf32, #tpu.memory_space<vmem>>, vector<2x8xf32>,
    } else {
    }
    %c0 = arith.constant 0 : index
    %c0_1 = arith.constant 0 : index
    %3 = vector.load %arg4[%c0, %c0_1] : memref<8x128xf32, #tpu.memory_space<vmem>>, vector<8x128xf32>
    %c0_2 = arith.constant 0 : index
    %c0_3 = arith.constant 0 : index
    %4 = vector.load %arg8[%c0_2, %c0_3] : memref<2x8xf32, #tpu.memory_space<vmem>>, vector<2x8xf32>
    %cst = arith.constant dense<0.000000e+00> : vector<2x128xf32>
    %5 = tpu.matmul %4, %3, %cst {dimension_numbers = #tpu.dot_dimension_numbers<[1], [0], [0], [1], [0, 0, 1, 1], [], []>} : vector<2x8xf32>, vector<8x128xf32>, vector<2x128xf32> -> vector<2x128xf32>
    %c0_4 = arith.constant 0 : index
    %c0_5 = arith.constant 0 : index
    %6 = vector.load %arg5[%c0_4, %c0_5] : memref<1x128xf32, #tpu.memory_space<vmem>>, vector<1x128xf32>
    %7 = vector.broadcast %6 : vector<1x128xf32> to vector<2x128xf32>
    %8 = arith.addf %5, %7 : vector<2x128xf32>
    %c0_6 = arith.constant 0 : index
    %c0_7 = arith.constant 0 : index
    %9 = vector.load %arg6[%c0_6, %c0_7] : memref<2x128xf32, #tpu.memory_space<vmem>>, vector<2x128xf32>
    tpu.vector_store %arg6[%c0_6, %c0_7], %8 {strides = array<i32>} : memref<2x128xf32, #tpu.memory_space<vmem>>, vector<2x128xf32>,
    %cst_8 = arith.constant dense<0.000000e+00> : vector<8x8xf32>
    %10 = tpu.matmul %3, %3, %cst_8 {dimension_numbers = #tpu.dot_dimension_numbers<[1], [1], [0], [0], [0, 0, 1, 0], [], []>} : vector<8x128xf32>, vector<8x128xf32>, vector<8x8xf32> -> vector<8x8xf32>
    %c0_i32_9 = arith.constant 0 : i32
    %11 = arith.cmpi eq, %arg1, %c0_i32_9 : i32
    %12 = arith.extui %11 : i1 to i32
    %c0_i32_10 = arith.constant 0 : i32
    %13 = arith.cmpi ne, %12, %c0_i32_10 : i32
    scf.if %13 {
      %c0_13 = arith.constant 0 : index
      %c0_14 = arith.constant 0 : index
      %c0_15 = arith.constant 0 : index
      %17 = vector.load %arg7[%c0_13, %c0_14, %c0_15] : memref<1x8x8xf32, #tpu.memory_space<vmem>>, vector<1x8x8xf32>
      %18 = vector.shape_cast %17 : vector<1x8x8xf32> to vector<8x8xf32>
      %19 = vector.shape_cast %10 : vector<8x8xf32> to vector<1x8x8xf32>
      tpu.vector_store %arg7[%c0_13, %c0_14, %c0_15], %19 {strides = array<i32>} : memref<1x8x8xf32, #tpu.memory_space<vmem>>, vector<1x8x8xf32>,
    } else {
    }
    %c0_i32_11 = arith.constant 0 : i32
    %14 = arith.cmpi ne, %arg1, %c0_i32_11 : i32
    %15 = arith.extui %14 : i1 to i32
    %c0_i32_12 = arith.constant 0 : i32
    %16 = arith.cmpi ne, %15, %c0_i32_12 : i32
    scf.if %16 {
      %c0_13 = arith.constant 0 : index
      %c0_14 = arith.constant 0 : index
      %c0_15 = arith.constant 0 : index
      %17 = vector.load %arg7[%c0_13, %c0_14, %c0_15] : memref<1x8x8xf32, #tpu.memory_space<vmem>>, vector<1x8x8xf32>
      %18 = vector.shape_cast %17 : vector<1x8x8xf32> to vector<8x8xf32>
      %19 = arith.addf %18, %10 : vector<8x8xf32>
      %c0_16 = arith.constant 0 : index
      %c0_17 = arith.constant 0 : index
      %c0_18 = arith.constant 0 : index
      %20 = vector.load %arg7[%c0_16, %c0_17, %c0_18] : memref<1x8x8xf32, #tpu.memory_space<vmem>>, vector<1x8x8xf32>
      %21 = vector.shape_cast %20 : vector<1x8x8xf32> to vector<8x8xf32>
      %22 = vector.shape_cast %19 : vector<8x8xf32> to vector<1x8x8xf32>
      tpu.vector_store %arg7[%c0_16, %c0_17, %c0_18], %22 {strides = array<i32>} : memref<1x8x8xf32, #tpu.memory_space<vmem>>, vector<1x8x8xf32>,
    } else {
    }
    return
  }
  func.func @transform_0(%arg0: i32, %arg1: i32) -> (i32, i32) {
    %c0_i32 = arith.constant 0 : i32
    %c0_i32_0 = arith.constant 0 : i32
    %c0_i32_1 = arith.constant 0 : i32
    return %c0_i32, %c0_i32_0 : i32, i32
  }
  func.func @transform_1(%arg0: i32, %arg1: i32) -> (i32, i32) {
    %c0_i32 = arith.constant 0 : i32
    %c0_i32_0 = arith.constant 0 : i32
    %c0_i32_1 = arith.constant 0 : i32
    return %c0_i32, %c0_i32_0 : i32, i32
  }
  func.func @transform_2(%arg0: i32, %arg1: i32) -> (i32, i32) {
    %c1_i32 = arith.constant 1 : i32
    %0 = arith.muli %arg0, %c1_i32 : i32
    %1 = arith.addi %0, %arg1 : i32
    %c0_i32 = arith.constant 0 : i32
    %c0_i32_0 = arith.constant 0 : i32
    return %c0_i32, %1 : i32, i32
  }
  func.func @transform_3(%arg0: i32, %arg1: i32) -> (i32, i32) {
    %c1_i32 = arith.constant 1 : i32
    %0 = arith.muli %arg0, %c1_i32 : i32
    %1 = arith.addi %0, %arg1 : i32
    %c0_i32 = arith.constant 0 : i32
    %c0_i32_0 = arith.constant 0 : i32
    return %c0_i32, %1 : i32, i32
  }
  func.func @transform_4(%arg0: i32, %arg1: i32) -> (i32, i32) {
    %c1_i32 = arith.constant 1 : i32
    %0 = arith.muli %arg0, %c1_i32 : i32
    %1 = arith.addi %0, %arg1 : i32
    %c0_i32 = arith.constant 0 : i32
    %c0_i32_0 = arith.constant 0 : i32
    return %c0_i32, %1 : i32, i32
  }
  func.func @transform_5(%arg0: i32, %arg1: i32) -> (i32, i32, i32) {
    %c0_i32 = arith.constant 0 : i32
    %c0_i32_0 = arith.constant 0 : i32
    %c0_i32_1 = arith.constant 0 : i32
    return %arg0, %c0_i32, %c0_i32_0 : i32, i32, i32
  }
}

</mosaic_0001>

<llo_original>
// kernel: tpu_custom_call.1
$region0: #{tpu_custom_call.1}
  #allocation0 [shape = 'u32[]', space=smem, size = 0x4, offset = 0x4, fixed_abs, tag = 'smem constant byte address 0x4 - core index']
  #allocation1 [shape = 'u32[144,128]{1,0:T(1,128)}', space=vmem, size = 0x12000, scoped, tag = 'internal scratch']
  #allocation2 [shape = 'f32[2,8]{1,0:T(2,128)}', space=vmem, size = 0x400, scoped, tag = 'scratch operand']
  %s0 = inlined_call_operand.hbm [shape: f32[2,8], index: 0, kind: input, shape index: {}]
  %s1 = inlined_call_operand.vmem [shape: f32[1,8], index: 1, kind: input, shape index: {}]
  %s2 = inlined_call_operand.hbm [shape: f32[8,256], index: 2, kind: input, shape index: {}]
  %s3 = inlined_call_operand.vmem [shape: f32[1,256], index: 3, kind: input, shape index: {}]
  %s4 = inlined_call_operand.hbm [shape: f32[2,256], index: 4, kind: output, shape index: {0}]
  %s5 = inlined_call_operand.hbm [shape: f32[2,8,8], index: 5, kind: output, shape index: {1}]
  %6 = xla_tuple %s4, %s5
  %s7 = sld [smem:[#allocation0]]
  $region77: #{tpu_custom_call.1} parent=0
    _
  %s9 = ssub.s32 1, %s7
  %s10 = scalar_select 0, %s9, %s7
  $region1: #{tpu_custom_call.1} parent=0
    #allocation3 [shape = 'u8[1024]{0}', space=vmem, size = 0x400, scoped, tag = 'input window, operand 0, single buffered']
    #allocation4 [shape = 's32[2]{0}', space=sflag, size = 0x8, scoped, tag = 'scoped memory for tpu_custom_call.1']
    #allocation5 [shape = 's32[2]{0}', space=sflag, size = 0x8, scoped, tag = 'scoped memory for tpu_custom_call.1']
    #allocation6 [shape = 'u8[8192]{0}', space=vmem, size = 0x2000, scoped, tag = 'input window, operand 2']
    #allocation7 [shape = 's32[2]{0}', space=sflag, size = 0x8, scoped, tag = 'scoped memory for tpu_custom_call.1']
    #allocation8 [shape = 'u8[2048]{0}', space=vmem, size = 0x800, scoped, tag = 'output window, operand 0']
    #allocation9 [shape = 'u8[8192]{0}', space=vmem, size = 0x2000, scoped, tag = 'output window, operand 1']
    #allocation10 [shape = 's32[2]{0}', space=sflag, size = 0x8, scoped, tag = 'scoped memory for tpu_custom_call.1']
    %11 = vsyncpa [#allocation4], 0
    %12 = vsyncpa [#allocation7], 0
    %s13 = scalar_lea.sflag [#allocation7], 1
    %14 = vsyncpa %s13, 0
    %15 = vsyncpa [#allocation5], 0
    %s16 = scalar_lea.sflag [#allocation5], 1
    %17 = vsyncpa %s16, 0
    %18 = vsyncpa [#allocation10], 0
    %s19 = scalar_lea.sflag [#allocation10], 1
    %20 = vsyncpa %s19, 0
    loop: start=0, step=1, limit=4
    $region2: #{tpu_custom_call.1} parent=1 // loop_pre_header
      _
    $region3: #{tpu_custom_call.1} parent=1 // loop_header
      %s22 = sphi 0, %s26
      %p23 = scmp.ge.s32.totalorder %s22, 4
      %s29 = sphi 0, %s41
      %s30 = sphi 0, %s37
      %s31 = sphi 0, %s29
      %s32 = sphi 0, %s30
      %s33 = sphi 0, %s31
      %s34 = sphi 0, %s32
      %s42 = sphi 0, %s42
      %s44 = sphi 0, %s42
      %s45 = sphi 0, %s44
      %s59 = sphi 0, %s45
      %s63 = sphi 0, %s63
      %s65 = sphi 0, %s63
      %s66 = sphi 0, %s65
      %s80 = sphi 0, %s66
      %s88 = sphi 0, %s90
      %s91 = sphi 0, %s88
      %s92 = sphi 0, %s91
      %s108 = sphi 0, %s92
      %s116 = sphi 0, %s118
      %s119 = sphi 0, %s116
      %s120 = sphi 0, %s119
      %s136 = sphi 0, %s120
      %s144 = sphi 0, %s146
      %s147 = sphi 0, %s144
      %s148 = sphi 0, %s147
      %s164 = sphi 0, %s148
      %s170 = sphi 0, %s172
      %s173 = sphi 0, %s170
      %s174 = sphi 0, %s173
      %s190 = sphi 0, %s174
    $region4: #{tpu_custom_call.1} parent=1 // loop_header_branch
      %25 = sbr.rel (%p23) target = $region8
    $region5: #{tpu_custom_call.1} parent=1 // loop_body
      %s27 = ssub.s32 %s22, 1
      %s28 = ssub.s32 %s22, 2
      %s35 = sadd.s32 1, %s30
      %p36 = scmp.ge.s32.totalorder %s35, 1
      %s37 = scalar_select %p36, 0, %s35
      %s38 = sadd.s32 1, %s29
      %s39 = scalar_select %p36, %s38, %s29
      %p40 = scmp.ge.s32.totalorder %s39, 2
      %s41 = scalar_select %p40, 0, %s39
      %s43 = sadd.s32 %s42, 1
      %p46 = scmp.eq.s32.totalorder %s22, 1
      %p47 = scmp.ne.s32.totalorder %s42, %s44
      %p48 = scmp.eq.s32.totalorder %s22, 0
      %p49 = por %p47, %p48
      %p50 = scmp.ne.s32.totalorder %s42, %s44
      %p51 = scmp.eq.s32.totalorder %s27, 1
      %p52 = por %p50, %p51
      %p53 = scmp.ne.s32.totalorder %s44, %s45
      %p54 = scmp.eq.s32.totalorder %s27, 0
      %p55 = por %p53, %p54
      %p56 = scmp.ne.s32.totalorder %s44, %s45
      %p57 = scmp.eq.s32.totalorder %s28, 1
      %p58 = por %p56, %p57
      %p60 = scmp.ne.s32.totalorder %s45, %s59
      %p61 = scmp.eq.s32.totalorder %s28, 0
      %p62 = por %p60, %p61
      %s64 = sadd.s32 %s63, 1
      %p67 = scmp.eq.s32.totalorder %s22, 1
      %p68 = scmp.ne.s32.totalorder %s63, %s65
      %p69 = scmp.eq.s32.totalorder %s22, 0
      %p70 = por %p68, %p69
      %p71 = scmp.ne.s32.totalorder %s63, %s65
      %p72 = scmp.eq.s32.totalorder %s27, 1
      %p73 = por %p71, %p72
      %p74 = scmp.ne.s32.totalorder %s65, %s66
      %p75 = scmp.eq.s32.totalorder %s27, 0
      %p76 = por %p74, %p75
      %p77 = scmp.ne.s32.totalorder %s65, %s66
      %p78 = scmp.eq.s32.totalorder %s28, 1
      %p79 = por %p77, %p78
      %p81 = scmp.ne.s32.totalorder %s66, %s80
      %p82 = scmp.eq.s32.totalorder %s28, 0
      %p83 = por %p81, %p82
      %s84 = sadd.s32 %s29, %s30
      %s85 = sadd.s32 %s41, %s37
      %s86 = ssub.s32 %s84, %s85
      %p87 = scmp.eq.s32.totalorder %s86, 0
      %s89 = sadd.s32 %s88, 1
      %s90 = scalar_select %p87, %s88, %s89
      %p93 = pneg %p87
      %p94 = scmp.eq.s32.totalorder %s22, 1
      %p95 = por %p93, %p94
      %p96 = scmp.ne.s32.totalorder %s88, %s91
      %p97 = scmp.eq.s32.totalorder %s22, 0
      %p98 = por %p96, %p97
      %p99 = scmp.ne.s32.totalorder %s88, %s91
      %p100 = scmp.eq.s32.totalorder %s27, 1
      %p101 = por %p99, %p100
      %p102 = scmp.ne.s32.totalorder %s91, %s92
      %p103 = scmp.eq.s32.totalorder %s27, 0
      %p104 = por %p102, %p103
      %p105 = scmp.ne.s32.totalorder %s91, %s92
      %p106 = scmp.eq.s32.totalorder %s28, 1
      %p107 = por %p105, %p106
      %p109 = scmp.ne.s32.totalorder %s92, %s108
      %p110 = scmp.eq.s32.totalorder %s28, 0
      %p111 = por %p109, %p110
      %s112 = sadd.s32 %s29, %s30
      %s113 = sadd.s32 %s41, %s37
      %s114 = ssub.s32 %s112, %s113
      %p115 = scmp.eq.s32.totalorder %s114, 0
      %s117 = sadd.s32 %s116, 1
      %s118 = scalar_select %p115, %s116, %s117
      %p121 = pneg %p115
      %p122 = scmp.eq.s32.totalorder %s22, 1
      %p123 = por %p121, %p122
      %p124 = scmp.ne.s32.totalorder %s116, %s119
      %p125 = scmp.eq.s32.totalorder %s22, 0
      %p126 = por %p124, %p125
      %p127 = scmp.ne.s32.totalorder %s116, %s119
      %p128 = scmp.eq.s32.totalorder %s27, 1
      %p129 = por %p127, %p128
      %p130 = scmp.ne.s32.totalorder %s119, %s120
      %p131 = scmp.eq.s32.totalorder %s27, 0
      %p132 = por %p130, %p131
      %p133 = scmp.ne.s32.totalorder %s119, %s120
      %p134 = scmp.eq.s32.totalorder %s28, 1
      %p135 = por %p133, %p134
      %p137 = scmp.ne.s32.totalorder %s120, %s136
      %p138 = scmp.eq.s32.totalorder %s28, 0
      %p139 = por %p137, %p138
      %s140 = sadd.s32 %s29, %s30
      %s141 = sadd.s32 %s41, %s37
      %s142 = ssub.s32 %s140, %s141
      %p143 = scmp.eq.s32.totalorder %s142, 0
      %s145 = sadd.s32 %s144, 1
      %s146 = scalar_select %p143, %s144, %s145
      %p149 = pneg %p143
      %p150 = scmp.eq.s32.totalorder %s22, 1
      %p151 = por %p149, %p150
      %p152 = scmp.ne.s32.totalorder %s144, %s147
      %p153 = scmp.eq.s32.totalorder %s22, 0
      %p154 = por %p152, %p153
      %p155 = scmp.ne.s32.totalorder %s144, %s147
      %p156 = scmp.eq.s32.totalorder %s27, 1
      %p157 = por %p155, %p156
      %p158 = scmp.ne.s32.totalorder %s147, %s148
      %p159 = scmp.eq.s32.totalorder %s27, 0
      %p160 = por %p158, %p159
      %p161 = scmp.ne.s32.totalorder %s147, %s148
      %p162 = scmp.eq.s32.totalorder %s28, 1
      %p163 = por %p161, %p162
      %p165 = scmp.ne.s32.totalorder %s148, %s164
      %p166 = scmp.eq.s32.totalorder %s28, 0
      %p167 = por %p165, %p166
      %s168 = ssub.s32 %s29, %s41
      %p169 = scmp.eq.s32.totalorder %s168, 0
      %s171 = sadd.s32 %s170, 1
      %s172 = scalar_select %p169, %s170, %s171
      %p175 = pneg %p169
      %p176 = scmp.eq.s32.totalorder %s22, 1
      %p177 = por %p175, %p176
      %p178 = scmp.ne.s32.totalorder %s170, %s173
      %p179 = scmp.eq.s32.totalorder %s22, 0
      %p180 = por %p178, %p179
      %p181 = scmp.ne.s32.totalorder %s170, %s173
      %p182 = scmp.eq.s32.totalorder %s27, 1
      %p183 = por %p181, %p182
      %p184 = scmp.ne.s32.totalorder %s173, %s174
      %p185 = scmp.eq.s32.totalorder %s27, 0
      %p186 = por %p184, %p185
      %p187 = scmp.ne.s32.totalorder %s173, %s174
      %p188 = scmp.eq.s32.totalorder %s28, 1
      %p189 = por %p187, %p188
      %p191 = scmp.ne.s32.totalorder %s174, %s190
      %p192 = scmp.eq.s32.totalorder %s28, 0
      %p193 = por %p191, %p192
      %p194 = scmp.le.s32.totalorder 1, %s22
      %p195 = scmp.lt.s32.totalorder %s22, 3
      %p196 = pnand %p194, %p195
      %p197 = pneg %p196
      // Predicated region
      $region9: #{tpu_custom_call.1} parent=5 // pred_check
        _
      $region10: #{tpu_custom_call.1} parent=5 // pred_check_branch
        %199 = sbr.rel (%p196) target = $region12
      $region11: #{tpu_custom_call.1} parent=5 // pred_region
        %s200 = ssub.s32 %s22, 1
        // Predicated region
        $region13: #{tpu_custom_call.1} parent=11 // pred_check
          %p201 = pneg %p55
        $region14: #{tpu_custom_call.1} parent=11 // pred_check_branch
          %203 = sbr.rel (%p201) target = $region16
        $region15: #{tpu_custom_call.1} parent=11 // pred_region
          %s205 = ssub.s32 32, 32
          %206 = vsyncadd [#allocation4], %s205
          %s208 = sshll.u32 [#allocation3], 4
          %s209 = int_to_ptr.vmem [resolvable:$true] %s208
          %211 = dma.hbm_to_vmem [thread:$0]  %s0, 32, %s209, [#allocation4]
        $region16: #{tpu_custom_call.1} parent=11 // pred_fallthru
          _
        // Predicated region
        $region17: #{tpu_custom_call.1} parent=11 // pred_check
          %p212 = pneg %p76
        $region18: #{tpu_custom_call.1} parent=11 // pred_check_branch
          %214 = sbr.rel (%p212) target = $region20
        $region19: #{tpu_custom_call.1} parent=11 // pred_region
          _
        $region20: #{tpu_custom_call.1} parent=11 // pred_fallthru
          _
      $region12: #{tpu_custom_call.1} parent=5 // pred_fallthru
        _
      %p215 = scmp.lt.s32.totalorder %s22, 2
      // Predicated region
      $region21: #{tpu_custom_call.1} parent=5 // pred_check
        %p216 = pneg %p215
      $region22: #{tpu_custom_call.1} parent=5 // pred_check_branch
        %218 = sbr.rel (%p216) target = $region24
      $region23: #{tpu_custom_call.1} parent=5 // pred_region
        // Predicated region
        $region25: #{tpu_custom_call.1} parent=23 // pred_check
          %p219 = pneg %p98
        $region26: #{tpu_custom_call.1} parent=23 // pred_check_branch
          %221 = sbr.rel (%p219) target = $region28
        $region27: #{tpu_custom_call.1} parent=23 // pred_region
          %s222 = sand.u32 %s88, 1
          %s223 = scalar_lea.sflag [#allocation7], %s222
          %s224 = sand.u32 %s88, 1
          %s225 = smul.addr %s224, 8
          %s226 = scalar_lea.vmem [#allocation6], %s225
          %s227 = sadd.s32 %s29, %s30
          %s229 = ssub.s32 128, 128
          %230 = vsyncadd %s223, %s229
          %s231 = smul.addr %s227, 128
          %s232 = scalar_lea.hbm %s2, %s231
          %s234 = sshll.u32 %s226, 4
          %s235 = int_to_ptr.vmem [resolvable:$true] %s234
          %237 = dma.hbm_to_vmem [thread:$0]  %s232, 128, %s235, %s223
        $region28: #{tpu_custom_call.1} parent=23 // pred_fallthru
          _
        // Predicated region
        $region29: #{tpu_custom_call.1} parent=23 // pred_check
          %p238 = pneg %p126
        $region30: #{tpu_custom_call.1} parent=23 // pred_check_branch
          %240 = sbr.rel (%p238) target = $region32
        $region31: #{tpu_custom_call.1} parent=23 // pred_region
          %s241 = sadd.s32 %s29, %s30
          %p242 = scmp.lt.s32.totalorder %s241, 1
          %s243 = scalar_select %p242, %s241, 1
          %s244 = scalar_lea.vmem %s3, %s243
          %s245 = sadd.s32 %s29, %s30
        $region32: #{tpu_custom_call.1} parent=23 // pred_fallthru
          _
      $region24: #{tpu_custom_call.1} parent=5 // pred_fallthru
        _
      %p246 = scmp.le.s32.totalorder 1, %s22
      %p247 = scmp.lt.s32.totalorder %s22, 3
      %p248 = pnand %p246, %p247
      %p249 = pneg %p248
      // Predicated region
      $region33: #{tpu_custom_call.1} parent=5 // pred_check
        _
      $region34: #{tpu_custom_call.1} parent=5 // pred_check_branch
        %251 = sbr.rel (%p248) target = $region36
      $region35: #{tpu_custom_call.1} parent=5 // pred_region
        %s252 = ssub.s32 %s22, 1
        // Predicated region
        $region37: #{tpu_custom_call.1} parent=35 // pred_check
          %p253 = pneg %p55
        $region38: #{tpu_custom_call.1} parent=35 // pred_check_branch
          %255 = sbr.rel (%p253) target = $region40
        $region39: #{tpu_custom_call.1} parent=35 // pred_region
          %256 = dma.done [#allocation4], 32
        $region40: #{tpu_custom_call.1} parent=35 // pred_fallthru
          _
        %s257 = sand.u32 %s91, 1
        %s258 = scalar_lea.sflag [#allocation7], %s257
        %s259 = sand.u32 %s91, 1
        %s260 = smul.addr %s259, 8
        %s261 = scalar_lea.vmem [#allocation6], %s260
        // Predicated region
        $region41: #{tpu_custom_call.1} parent=35 // pred_check
          %p262 = pneg %p104
        $region42: #{tpu_custom_call.1} parent=35 // pred_check_branch
          %264 = sbr.rel (%p262) target = $region44
        $region43: #{tpu_custom_call.1} parent=35 // pred_region
          %265 = dma.done %s258, 128
        $region44: #{tpu_custom_call.1} parent=35 // pred_fallthru
          _
        %p266 = pneg %p55
        %p267 = pneg %p52
        %p268 = pneg %p76
        %p269 = pneg %p73
        %s270 = sand.u32 %s91, 1
        %s271 = scalar_lea.sflag [#allocation7], %s270
        %s272 = sand.u32 %s91, 1
        %s273 = smul.addr %s272, 8
        %s274 = scalar_lea.vmem [#allocation6], %s273
        %p275 = pneg %p104
        %p276 = pneg %p101
        %s277 = sadd.s32 %s31, %s32
        %p278 = scmp.lt.s32.totalorder %s277, 1
        %s279 = scalar_select %p278, %s277, 1
        %s280 = scalar_lea.vmem %s3, %s279
        %p281 = pneg %p132
        %p282 = pneg %p129
        %p283 = pneg %p160
        %p284 = pneg %p157
        %s285 = sand.u32 %s147, 1
        %s286 = scalar_lea.sflag [#allocation5], %s285
        %s287 = sand.u32 %s147, 1
        %s288 = smul.addr %s287, 2
        %s289 = scalar_lea.vmem [#allocation8], %s288
        %p290 = pneg %p186
        %p291 = pneg %p183
        %s292 = sand.u32 %s173, 1
        %s293 = scalar_lea.sflag [#allocation10], %s292
        %s294 = sand.u32 %s173, 1
        %s295 = smul.addr %s294, 8
        %s296 = scalar_lea.vmem [#allocation9], %s295
        %s297 = sadd.s32 %s31, %s32
        %s298 = sadd.s32 %s31, %s32
        %p299 = scmp.lt.s32.totalorder %s298, 1
        %s300 = scalar_select %p299, %s298, 1
        %s301 = scalar_lea.vmem %s3, %s300
        %s302 = sadd.s32 %s31, %s32
        %s303 = sadd.s32 %s31, %s32
        %p304 = scmp.eq.s32.totalorder %s32, 0
        // Predicated region
        $region45: #{tpu_custom_call.1} parent=35 // pred_check
          %p305 = pneg %p304
        $region46: #{tpu_custom_call.1} parent=35 // pred_check_branch
          %307 = sbr.rel (%p305) target = $region48
        $region47: #{tpu_custom_call.1} parent=35 // pred_region
          %v308 = vld [vmem:[#allocation3] sm:$0x3]
          %v309 = vld [vmem:[%s1] sm:$0x1]
          %v311 = vlaneseq
          %v312 = vshrl.u32 %v311, 7
          %v313 = vsub.s32 0, %v312
          %v314 = vrot.slane %v309, %v313
          %v316 = vmul.f32 %v308, %v314
          %vm317 = vcmask 58368
          %318 = vst.msk [vmem:[#allocation2] sm:$0x3] %vm317, %v316
        $region48: #{tpu_custom_call.1} parent=35 // pred_fallthru
          _
        %v319 = vld [vmem:[%s261] sm:$0xff]
        %v320 = vld [vmem:[#allocation2] sm:$0x3]
        %v321 = vld [vmem:[%s301] sm:$0x1]
        %v323 = vlaneseq
        %v324 = vshrl.u32 %v323, 7
        %v325 = vsub.s32 0, %v324
        %v326 = vrot.slane %v321, %v325
        %vm328 = vcmask 64512
        %v330 = vsel %vm328, %v320, 0
        %332 = vmatprep.subr.mxu0 0.0
        %333 = vmatpush1.msra.mxu0 %v319
        %334 = vmatprep.subr.mxu0 0.0
        %335 = vmatpush1.msra.mxu0 0.0
        %336 = vmatprep.subr.mxu0 0.0
        %337 = vmatpush1.msra.mxu0 0.0
        %338 = vmatprep.subr.mxu0 0.0
        %339 = vmatpush1.msra.mxu0 0.0
        %340 = vmatprep.subr.mxu0 0.0
        %341 = vmatpush1.msra.mxu0 0.0
        %342 = vmatprep.subr.mxu0 0.0
        %343 = vmatpush1.msra.mxu0 0.0
        %344 = vmatprep.subr.mxu0 0.0
        %345 = vmatpush1.msra.mxu0 0.0
        %346 = vmatprep.subr.mxu0 0.0
        %347 = vmatpush1.msra.mxu0 0.0
        %348 = vmatprep.subr.mxu0 0.0
        %349 = vmatpush1.msra.mxu0 0.0
        %350 = vmatprep.subr.mxu0 0.0
        %351 = vmatpush1.msra.mxu0 0.0
        %352 = vmatprep.subr.mxu0 0.0
        %353 = vmatpush1.msra.mxu0 0.0
        %354 = vmatprep.subr.mxu0 0.0
        %355 = vmatpush1.msra.mxu0 0.0
        %356 = vmatprep.subr.mxu0 0.0
        %357 = vmatpush1.msra.mxu0 0.0
        %358 = vmatprep.subr.mxu0 0.0
        %359 = vmatpush1.msra.mxu0 0.0
        %360 = vmatprep.subr.mxu0 0.0
        %361 = vmatpush1.msra.mxu0 0.0
        %362 = vmatprep.subr.mxu0 0.0
        %363 = vmatpush1.msra.mxu0 0.0
        %364 = vmatprep.subr.mxu0 0.0
        %365 = vmatpush1.msra.mxu0 0.0
        %366 = vmatprep.subr.mxu0 0.0
        %367 = vmatpush1.msra.mxu0 0.0
        %368 = vmatprep.subr.mxu0 0.0
        %369 = vmatpush1.msra.mxu0 0.0
        %370 = vmatprep.subr.mxu0 0.0
        %371 = vmatpush1.msra.mxu0 0.0
        %372 = vmatprep.subr.mxu0 0.0
        %373 = vmatpush1.msra.mxu0 0.0
        %374 = vmatprep.subr.mxu0 0.0
        %375 = vmatpush1.msra.mxu0 0.0
        %376 = vmatprep.subr.mxu0 0.0
        %377 = vmatpush1.msra.mxu0 0.0
        %378 = vmatprep.subr.mxu0 0.0
        %379 = vmatpush1.msra.mxu0 0.0
        %380 = vmatprep.subr.mxu0 0.0
        %381 = vmatpush1.msra.mxu0 0.0
        %382 = vmatprep.subr.mxu0 0.0
        %383 = vmatpush1.msra.mxu0 0.0
        %384 = vmatprep.subr.mxu0 0.0
        %385 = vmatpush1.msra.mxu0 0.0
        %386 = vmatprep.subr.mxu0 0.0
        %387 = vmatpush1.msra.mxu0 0.0
        %388 = vmatprep.subr.mxu0 0.0
        %389 = vmatpush1.msra.mxu0 0.0
        %390 = vmatprep.subr.mxu0 0.0
        %391 = vmatpush1.msra.mxu0 0.0
        %392 = vmatprep.subr.mxu0 0.0
        %393 = vmatpush1.msra.mxu0 0.0
        %394 = vmatprep.subr.mxu0 0.0
        %395 = vmatpush1.msra.mxu0 0.0
        %396 = vmatprep.mubr.f32.mxu0 0.0
        %397 = vmatmul.mubr.f32.gmra.mrb[0].mxu0 %v330
        %v398 = vpop.f32.mrb[0].mxu0
        %v399 = vadd.f32 %v326, %v398
        %v400 = vpop.f32.mrb[0].mxu0
        %401 = vdwg.mxu0
        %402 = vst [vmem:[%s289] sm:$0x3] %v399
        %403 = vmatprep.subr.mxu0 0.0
        %404 = vmatpush1.xpose.msra.mxu0 %v319
        %405 = vmatprep.subr.mxu0 0.0
        %406 = vmatpush1.xpose.msra.mxu0 0.0
        %407 = vmatprep.subr.mxu0 0.0
        %408 = vmatpush1.xpose.msra.mxu0 0.0
        %409 = vmatprep.subr.mxu0 0.0
        %410 = vmatpush1.xpose.msra.mxu0 0.0
        %411 = vmatprep.subr.mxu0 0.0
        %412 = vmatpush1.xpose.msra.mxu0 0.0
        %413 = vmatprep.subr.mxu0 0.0
        %414 = vmatpush1.xpose.msra.mxu0 0.0
        %415 = vmatprep.subr.mxu0 0.0
        %416 = vmatpush1.xpose.msra.mxu0 0.0
        %417 = vmatprep.subr.mxu0 0.0
        %418 = vmatpush1.xpose.msra.mxu0 0.0
        %419 = vmatprep.subr.mxu0 0.0
        %420 = vmatpush1.xpose.msra.mxu0 0.0
        %421 = vmatprep.subr.mxu0 0.0
        %422 = vmatpush1.xpose.msra.mxu0 0.0
        %423 = vmatprep.subr.mxu0 0.0
        %424 = vmatpush1.xpose.msra.mxu0 0.0
        %425 = vmatprep.subr.mxu0 0.0
        %426 = vmatpush1.xpose.msra.mxu0 0.0
        %427 = vmatprep.subr.mxu0 0.0
        %428 = vmatpush1.xpose.msra.mxu0 0.0
        %429 = vmatprep.subr.mxu0 0.0
        %430 = vmatpush1.xpose.msra.mxu0 0.0
        %431 = vmatprep.subr.mxu0 0.0
        %432 = vmatpush1.xpose.msra.mxu0 0.0
        %433 = vmatprep.subr.mxu0 0.0
        %434 = vmatpush1.xpose.msra.mxu0 0.0
        %435 = vmatprep.subr.mxu0 0.0
        %436 = vmatpush1.xpose.msra.mxu0 0.0
        %437 = vmatprep.subr.mxu0 0.0
        %438 = vmatpush1.xpose.msra.mxu0 0.0
        %439 = vmatprep.subr.mxu0 0.0
        %440 = vmatpush1.xpose.msra.mxu0 0.0
        %441 = vmatprep.subr.mxu0 0.0
        %442 = vmatpush1.xpose.msra.mxu0 0.0
        %443 = vmatprep.subr.mxu0 0.0
        %444 = vmatpush1.xpose.msra.mxu0 0.0
        %445 = vmatprep.subr.mxu0 0.0
        %446 = vmatpush1.xpose.msra.mxu0 0.0
        %447 = vmatprep.subr.mxu0 0.0
        %448 = vmatpush1.xpose.msra.mxu0 0.0
        %449 = vmatprep.subr.mxu0 0.0
        %450 = vmatpush1.xpose.msra.mxu0 0.0
        %451 = vmatprep.subr.mxu0 0.0
        %452 = vmatpush1.xpose.msra.mxu0 0.0
        %453 = vmatprep.subr.mxu0 0.0
        %454 = vmatpush1.xpose.msra.mxu0 0.0
        %455 = vmatprep.subr.mxu0 0.0
        %456 = vmatpush1.xpose.msra.mxu0 0.0
        %457 = vmatprep.subr.mxu0 0.0
        %458 = vmatpush1.xpose.msra.mxu0 0.0
        %459 = vmatprep.subr.mxu0 0.0
        %460 = vmatpush1.xpose.msra.mxu0 0.0
        %461 = vmatprep.subr.mxu0 0.0
        %462 = vmatpush1.xpose.msra.mxu0 0.0
        %463 = vmatprep.subr.mxu0 0.0
        %464 = vmatpush1.xpose.msra.mxu0 0.0
        %465 = vmatprep.subr.mxu0 0.0
        %466 = vmatpush1.xpose.msra.mxu0 0.0
        %467 = vmatprep.mubr.f32.mxu0 0.0
        %468 = vmatmul.mubr.f32.gmra.mrb[0].mxu0 %v319
        %v469 = vpop.f32.mrb[0].mxu0
        %v470 = vadd.f32 0.0, %v469
        %v471 = vpop.f32.mrb[0].mxu0
        %472 = vdwg.mxu0
        // Predicated region
        $region49: #{tpu_custom_call.1} parent=35 // pred_check
          %p473 = pneg %p304
        $region50: #{tpu_custom_call.1} parent=35 // pred_check_branch
          %475 = sbr.rel (%p473) target = $region52
        $region51: #{tpu_custom_call.1} parent=35 // pred_region
          %476 = vst.msk [vmem:[%s296] sm:$0xff] %vm328, %v470
        $region52: #{tpu_custom_call.1} parent=35 // pred_fallthru
          _
        %p477 = scmp.ne.s32.totalorder %s32, 0
        // Predicated region
        $region53: #{tpu_custom_call.1} parent=35 // pred_check
          %p478 = pneg %p477
        $region54: #{tpu_custom_call.1} parent=35 // pred_check_branch
          %480 = sbr.rel (%p478) target = $region56
        $region55: #{tpu_custom_call.1} parent=35 // pred_region
          %v481 = vld [vmem:[%s296] sm:$0xff]
          %v482 = vadd.f32 %v481, %v470
          %483 = vst.msk [vmem:[%s296] sm:$0xff] %vm328, %v482
        $region56: #{tpu_custom_call.1} parent=35 // pred_fallthru
          _
        %s484 = sand.u32 %s147, 1
        %s485 = scalar_lea.sflag [#allocation5], %s484
        %s486 = sand.u32 %s147, 1
        %s487 = smul.addr %s486, 2
        %s488 = scalar_lea.vmem [#allocation8], %s487
        %s489 = sand.u32 %s173, 1
        %s490 = scalar_lea.sflag [#allocation10], %s489
        %s491 = sand.u32 %s173, 1
        %s492 = smul.addr %s491, 8
        %s493 = scalar_lea.vmem [#allocation9], %s492
        // Predicated region
        $region57: #{tpu_custom_call.1} parent=35 // pred_check
          %p494 = pneg %p157
        $region58: #{tpu_custom_call.1} parent=35 // pred_check_branch
          %496 = sbr.rel (%p494) target = $region60
        $region59: #{tpu_custom_call.1} parent=35 // pred_region
          %s497 = sadd.s32 %s31, %s32
          %s499 = ssub.s32 32, 32
          %500 = vsyncadd %s485, %s499
          %s501 = smul.addr %s497, 32
          %s502 = scalar_lea.hbm %s4, %s501
          %s504 = sshll.u32 %s488, 4
          %s505 = int_to_ptr.vmem [resolvable:$true] %s504
          %507 = dma.vmem_to_hbm [thread:$0]  %s505, 32, %s502, %s485
        $region60: #{tpu_custom_call.1} parent=35 // pred_fallthru
          _
        // Predicated region
        $region61: #{tpu_custom_call.1} parent=35 // pred_check
          %p508 = pneg %p183
        $region62: #{tpu_custom_call.1} parent=35 // pred_check_branch
          %510 = sbr.rel (%p508) target = $region64
        $region63: #{tpu_custom_call.1} parent=35 // pred_region
          %s512 = ssub.s32 128, 128
          %513 = vsyncadd %s490, %s512
          %s514 = smul.addr %s31, 128
          %s515 = scalar_lea.hbm %s5, %s514
          %s517 = sshll.u32 %s493, 4
          %s518 = int_to_ptr.vmem [resolvable:$true] %s517
          %520 = dma.vmem_to_hbm [thread:$0]  %s518, 128, %s515, %s490
        $region64: #{tpu_custom_call.1} parent=35 // pred_fallthru
          _
      $region36: #{tpu_custom_call.1} parent=5 // pred_fallthru
        _
      %p521 = scmp.le.s32.totalorder 2, %s22
      // Predicated region
      $region65: #{tpu_custom_call.1} parent=5 // pred_check
        %p522 = pneg %p521
      $region66: #{tpu_custom_call.1} parent=5 // pred_check_branch
        %524 = sbr.rel (%p522) target = $region68
      $region67: #{tpu_custom_call.1} parent=5 // pred_region
        %s525 = ssub.s32 %s22, 2
        // Predicated region
        $region69: #{tpu_custom_call.1} parent=67 // pred_check
          %p526 = pneg %p163
        $region70: #{tpu_custom_call.1} parent=67 // pred_check_branch
          %528 = sbr.rel (%p526) target = $region72
        $region71: #{tpu_custom_call.1} parent=67 // pred_region
          %s529 = sand.u32 %s148, 1
          %s530 = scalar_lea.sflag [#allocation5], %s529
          %s531 = sand.u32 %s148, 1
          %s532 = smul.addr %s531, 2
          %s533 = scalar_lea.vmem [#allocation8], %s532
          %534 = dma.done %s530, 32
        $region72: #{tpu_custom_call.1} parent=67 // pred_fallthru
          _
        // Predicated region
        $region73: #{tpu_custom_call.1} parent=67 // pred_check
          %p535 = pneg %p189
        $region74: #{tpu_custom_call.1} parent=67 // pred_check_branch
          %537 = sbr.rel (%p535) target = $region76
        $region75: #{tpu_custom_call.1} parent=67 // pred_region
          %s538 = sand.u32 %s174, 1
          %s539 = scalar_lea.sflag [#allocation10], %s538
          %s540 = sand.u32 %s174, 1
          %s541 = smul.addr %s540, 8
          %s542 = scalar_lea.vmem [#allocation9], %s541
          %543 = dma.done %s539, 128
        $region76: #{tpu_custom_call.1} parent=67 // pred_fallthru
          _
      $region68: #{tpu_custom_call.1} parent=5 // pred_fallthru
        _
    $region6: #{tpu_custom_call.1} parent=1 // loop_footer
      %s26 = sadd.s32 1, %s22
    $region7: #{tpu_custom_call.1} parent=1 // loop_footer_branch
      %21 = sbr.rel target = $region3
    $region8: #{tpu_custom_call.1} parent=1 // loop_exit
      _
    %544 = vsyncpa [#allocation4], 1
    %s545 = scalar_lea.sflag [#allocation4], 1
    %546 = vsyncpa %s545, 1
    %547 = vsyncpa [#allocation7], 1
    %s548 = scalar_lea.sflag [#allocation7], 1
    %549 = vsyncpa %s548, 1
    %550 = vsyncpa [#allocation5], 1
    %s551 = scalar_lea.sflag [#allocation5], 1
    %552 = vsyncpa %s551, 1
    %553 = vsyncpa [#allocation10], 1
    %s554 = scalar_lea.sflag [#allocation10], 1
    %555 = vsyncpa %s554, 1

</llo_original>
